<compile_context>
chip_gen: v7x
topology: tpu7x:2x2x1
jax: 0.10.0
libtpu: 0.0.40
codegen_flags: <defaults>
</compile_context>

<pallas_src>
import functools

import jax
import jax.numpy as jnp
import numpy as np
from jax import lax
from jax.experimental import pallas as pl
from jax.experimental.pallas import tpu as pltpu


def _rwkv_channelmix_kernel(x_ref, wkr_ref, wv_ref, o_ref, *, hidden):
    # x_ref: (TM, C) f32 ; wkr_ref: (C, H+C) bf16 ; wv_ref: (H, C) bf16
    x = x_ref[...].astype(jnp.bfloat16)          # in-kernel cast (free on VPU)

    # Single MXU pass over x against the fused [key | receptance] weight.
    y = jnp.dot(x, wkr_ref[...], preferred_element_type=jnp.float32)   # [TM, H+C]
    xk = y[:, :hidden]                           # key(x)        [TM, H]
    r = y[:, hidden:]                            # receptance(x) [TM, C]

    # k = relu(key(x))^2 ; kv = value(k)
    k = jnp.square(jnp.maximum(xk, 0.0))
    kv = jnp.dot(k.astype(jnp.bfloat16), wv_ref[...],
                 preferred_element_type=jnp.float32)                    # [TM, C]

    # out = sigmoid(receptance(x)) * kv
    o_ref[...] = (jax.nn.sigmoid(r) * kv).astype(o_ref.dtype)


def prepare_rwkv_channelmix_weights(w_key, w_value, w_receptance):
    """One-time weight prep (do at module init, NOT per forward call).

    torch Linear weights are [out_features, in_features]:
      w_key: [H, C], w_value: [C, H], w_receptance: [C, C]
    Returns:
      w_keyrec_t: [C, H+C] bf16  = concat(W_key^T, W_receptance^T, axis=1)
      w_value_t:  [H, C]   bf16  = W_value^T
    """
    bf16 = jnp.bfloat16
    wk_t = jnp.asarray(w_key).T           # [C, H]
    wr_t = jnp.asarray(w_receptance).T    # [C, C]
    w_keyrec_t = jnp.concatenate([wk_t, wr_t], axis=1).astype(bf16)
    w_value_t = jnp.asarray(w_value).T.astype(bf16)
    return w_keyrec_t, w_value_t


def _round_up(a, m):
    return -(-a // m) * m


def _choose_row_tile(M, block_rows):
    """Sublane-aligned row tile; prefer >= 2 row blocks (v7x megacore)."""
    if M <= 8:
        return 8
    tm = min(block_rows, _round_up(-(-M // 2), 8))
    return max(8, tm)


def rwkv_channelmix(x, w_keyrec_t, w_value_t, *, block_rows=512):
    """Pallas forward of RWKVChannelMix.

    x:           [B, T, C] float32
    w_keyrec_t:  [C, H+C] bf16 (from prepare_rwkv_channelmix_weights)
    w_value_t:   [H, C]   bf16
    returns      [B, T, C] float32
    """
    B, T, C = x.shape
    HC = w_keyrec_t.shape[1]
    H = HC - C
    M = B * T

    xm = x.reshape(M, C)                     # free reshape, stays f32
    TM = _choose_row_tile(M, block_rows)
    M_pad = _round_up(M, TM)
    if M_pad != M:                           # only when M % TM != 0
        xm = jnp.pad(xm, ((0, M_pad - M), (0, 0)))

    grid = (M_pad // TM,)

    # Advisory cost estimate (helps XLA schedule the producer of x around us).
    flops = 2 * M_pad * C * HC + 2 * M_pad * H * C
    bytes_accessed = (4 * M_pad * C            # x (f32 in)
                      + 4 * M_pad * C          # out (f32)
                      + 2 * (C * HC + H * C))  # bf16 weights
    cost = pl.CostEstimate(flops=flops, transcendentals=M_pad * C,
                           bytes_accessed=bytes_accessed)

    try:
        vmem_cap = pltpu.get_tpu_info().vmem_capacity_bytes
    except Exception:
        vmem_cap = 64 * 1024 * 1024          # conservative fallback
    vmem_limit = min(int(vmem_cap * 3 // 4), 100 * 1024 * 1024)

    out = pl.pallas_call(
        functools.partial(_rwkv_channelmix_kernel, hidden=H),
        out_shape=jax.ShapeDtypeStruct((M_pad, C), jnp.float32),
        grid_spec=pltpu.PrefetchScalarGridSpec(
            num_scalar_prefetch=0,
            grid=grid,
            in_specs=[
                pl.BlockSpec((TM, C), lambda i: (i, 0)),      # x rows (streamed)
                pl.BlockSpec((C, HC), lambda i: (0, 0),
                             pipeline_mode=pl.Buffered(1)),   # fused key|recept. wt
                pl.BlockSpec((H, C), lambda i: (0, 0),
                             pipeline_mode=pl.Buffered(1)),   # value weight
            ],
            out_specs=pl.BlockSpec((TM, C), lambda i: (i, 0)),
        ),
        compiler_params=pltpu.CompilerParams(
            dimension_semantics=("parallel",),
            vmem_limit_bytes=vmem_limit,
        ),
        cost_estimate=cost,
    )(xm, w_keyrec_t, w_value_t)

    return out[:M].reshape(B, T, C)


def _reference(x, w_key, w_value, w_receptance):
    """Pure-JAX f32 reference of RWKVChannelMix.forward."""
    k = jnp.square(jnp.maximum(
        jnp.einsum("btc,hc->bth", x, w_key, precision=lax.Precision.HIGHEST), 0.0))
    kv = jnp.einsum("bth,ch->btc", k, w_value, precision=lax.Precision.HIGHEST)
    r = jnp.einsum("btc,dc->btd", x, w_receptance, precision=lax.Precision.HIGHEST)
    return jax.nn.sigmoid(r) * kv


if __name__ == "__main__":
    B, T, C = 2, 8, 128          # C multiple of 128 -> lane-dense output
    H = 4 * C                    # backbone_dim default (4 * embed_dim)

    key = jax.random.PRNGKey(0)
    k1, k2, k3, k4 = jax.random.split(key, 4)

    x = jax.random.normal(k1, (B, T, C), jnp.float32)
    # torch Linear weight layout: [out_features, in_features]
    w_key = jax.random.normal(k2, (H, C), jnp.float32) / jnp.sqrt(C)
    w_value = jax.random.normal(k3, (C, H), jnp.float32) / jnp.sqrt(H)
    w_receptance = jax.random.normal(k4, (C, C), jnp.float32) / jnp.sqrt(C)

    # One-time weight prep (would be cached at module init in real use).
    w_keyrec_t, w_value_t = prepare_rwkv_channelmix_weights(
        w_key, w_value, w_receptance)

    y = rwkv_channelmix(x, w_keyrec_t, w_value_t)
    jax.block_until_ready(y)

    # Sanity check vs. a pure-JAX f32 reference (kernel matmuls run in bf16).
    y_ref = _reference(x, w_key, w_value, w_receptance)
    np.testing.assert_allclose(np.asarray(y), np.asarray(y_ref),
                               rtol=5e-2, atol=5e-2)

    print("KERNEL_OK")
</pallas_src>

<mosaic_0001>
module attributes {stable_mosaic.version = 11 : i64} {
  func.func @_rwkv_channelmix_kernel(%arg0: i32, %arg1: memref<8x128xf32, #tpu.memory_space<vmem>>, %arg2: memref<128x640xbf16, #tpu.memory_space<vmem>>, %arg3: memref<512x128xbf16, #tpu.memory_space<vmem>>, %arg4: memref<8x128xf32, #tpu.memory_space<vmem>>) attributes {dimension_semantics = [#tpu.dimension_semantics<parallel>], iteration_bounds = array<i64: 2>, scalar_prefetch = 0 : i64, scratch_operands = 0 : i64, tpu.core_type = #tpu.core_type<tc>, window_params = [{transform_indices = @transform_0, window_bounds = array<i64: 8, 128>}, {pipeline_mode = #tpu.pipeline_mode<synchronous>, transform_indices = @transform_1, window_bounds = array<i64: 128, 640>}, {pipeline_mode = #tpu.pipeline_mode<synchronous>, transform_indices = @transform_2, window_bounds = array<i64: 512, 128>}, {transform_indices = @transform_3, window_bounds = array<i64: 8, 128>}]} {
    %c0 = arith.constant 0 : index
    %c0_0 = arith.constant 0 : index
    %0 = vector.load %arg1[%c0, %c0_0] : memref<8x128xf32, #tpu.memory_space<vmem>>, vector<8x128xf32>
    %1 = arith.truncf %0 : vector<8x128xf32> to vector<8x128xbf16>
    %c0_1 = arith.constant 0 : index
    %c0_2 = arith.constant 0 : index
    %2 = vector.load %arg2[%c0_1, %c0_2] : memref<128x640xbf16, #tpu.memory_space<vmem>>, vector<128x640xbf16>
    %cst = arith.constant dense<0.000000e+00> : vector<8x640xf32>
    %3 = tpu.matmul %1, %2, %cst {dimension_numbers = #tpu.dot_dimension_numbers<[1], [0], [0], [1], [0, 0, 1, 1], [], []>} : vector<8x128xbf16>, vector<128x640xbf16>, vector<8x640xf32> -> vector<8x640xf32>
    %4 = vector.extract_strided_slice %3 {offsets = [0, 0], sizes = [8, 512], strides = [1, 1]} : vector<8x640xf32> to vector<8x512xf32>
    %5 = vector.extract_strided_slice %3 {offsets = [0, 512], sizes = [8, 128], strides = [1, 1]} : vector<8x640xf32> to vector<8x128xf32>
    %cst_3 = arith.constant 0.000000e+00 : f32
    %6 = vector.broadcast %cst_3 : f32 to vector<8x512xf32>
    %7 = arith.maximumf %4, %6 : vector<8x512xf32>
    %8 = arith.mulf %7, %7 : vector<8x512xf32>
    %9 = arith.truncf %8 : vector<8x512xf32> to vector<8x512xbf16>
    %c0_4 = arith.constant 0 : index
    %c0_5 = arith.constant 0 : index
    %10 = vector.load %arg3[%c0_4, %c0_5] : memref<512x128xbf16, #tpu.memory_space<vmem>>, vector<512x128xbf16>
    %cst_6 = arith.constant dense<0.000000e+00> : vector<8x128xf32>
    %11 = tpu.matmul %9, %10, %cst_6 {dimension_numbers = #tpu.dot_dimension_numbers<[1], [0], [0], [1], [0, 0, 1, 1], [], []>} : vector<8x512xbf16>, vector<512x128xbf16>, vector<8x128xf32> -> vector<8x128xf32>
    %12 = arith.negf %5 : vector<8x128xf32>
    %13 = math.exp %12 : vector<8x128xf32>
    %cst_7 = arith.constant 1.000000e+00 : f32
    %14 = vector.broadcast %cst_7 : f32 to vector<8x128xf32>
    %15 = arith.addf %14, %13 : vector<8x128xf32>
    %16 = arith.divf %14, %15 : vector<8x128xf32>
    %17 = arith.mulf %16, %11 : vector<8x128xf32>
    %c0_8 = arith.constant 0 : index
    %c0_9 = arith.constant 0 : index
    %18 = vector.load %arg4[%c0_8, %c0_9] : memref<8x128xf32, #tpu.memory_space<vmem>>, vector<8x128xf32>
    tpu.vector_store %arg4[%c0_8, %c0_9], %17 {strides = array<i32>} : memref<8x128xf32, #tpu.memory_space<vmem>>, vector<8x128xf32>,
    return
  }
  func.func @transform_0(%arg0: i32) -> (i32, i32) {
    %c0_i32 = arith.constant 0 : i32
    %c0_i32_0 = arith.constant 0 : i32
    return %arg0, %c0_i32 : i32, i32
  }
  func.func @transform_1(%arg0: i32) -> (i32, i32) {
    %c0_i32 = arith.constant 0 : i32
    %c0_i32_0 = arith.constant 0 : i32
    %c0_i32_1 = arith.constant 0 : i32
    return %c0_i32, %c0_i32_0 : i32, i32
  }
  func.func @transform_2(%arg0: i32) -> (i32, i32) {
    %c0_i32 = arith.constant 0 : i32
    %c0_i32_0 = arith.constant 0 : i32
    %c0_i32_1 = arith.constant 0 : i32
    return %c0_i32, %c0_i32_0 : i32, i32
  }
  func.func @transform_3(%arg0: i32) -> (i32, i32) {
    %c0_i32 = arith.constant 0 : i32
    %c0_i32_0 = arith.constant 0 : i32
    return %arg0, %c0_i32 : i32, i32
  }
}

</mosaic_0001>

<llo_original>
// kernel: tpu_custom_call.1
$region0: #{tpu_custom_call.1}
  #allocation0 [shape = 'u32[]', space=smem, size = 0x4, offset = 0x4, fixed_abs, tag = 'smem constant byte address 0x4 - core index']
  #allocation1 [shape = 'u32[144,128]{1,0:T(1,128)}', space=vmem, size = 0x12000, scoped, tag = 'internal scratch']
  %s0 = inlined_call_operand.hbm [shape: f32[16,128], index: 0, kind: input, shape index: {}]
  %s1 = inlined_call_operand.hbm [shape: bf16[128,640], index: 1, kind: input, shape index: {}]
  %s2 = inlined_call_operand.hbm [shape: bf16[512,128], index: 2, kind: input, shape index: {}]
  %s3 = inlined_call_operand.hbm [shape: f32[16,128], index: 3, kind: output, shape index: {}]
  %s4 = sld [smem:[#allocation0]]
  $region57: #{tpu_custom_call.1} parent=0
    _
  %s6 = ssub.s32 1, %s4
  %s7 = scalar_select 0, %s6, %s4
  $region1: #{tpu_custom_call.1} parent=0
    #allocation2 [shape = 'u8[8192]{0}', space=vmem, size = 0x2000, scoped, tag = 'input window, operand 0']
    #allocation3 [shape = 's32[2]{0}', space=sflag, size = 0x8, scoped, tag = 'scoped memory for tpu_custom_call.1']
    #allocation4 [shape = 's32[2]{0}', space=sflag, size = 0x8, scoped, tag = 'scoped memory for tpu_custom_call.1']
    #allocation5 [shape = 'u8[163840]{0}', space=vmem, size = 0x28000, scoped, tag = 'input window, operand 1, single buffered']
    #allocation6 [shape = 's32[1]{0}', space=sflag, size = 0x4, scoped, tag = 'scoped memory for tpu_custom_call.1']
    #allocation7 [shape = 'u8[131072]{0}', space=vmem, size = 0x20000, scoped, tag = 'input window, operand 2, single buffered']
    #allocation8 [shape = 'u8[8192]{0}', space=vmem, size = 0x2000, scoped, tag = 'output window, operand 0']
    %8 = vsyncpa [#allocation3], 0
    %s9 = scalar_lea.sflag [#allocation3], 1
    %10 = vsyncpa %s9, 0
    %11 = vsyncpa [#allocation6], 0
    %12 = vsyncpa [#allocation4], 0
    %s13 = scalar_lea.sflag [#allocation4], 1
    %14 = vsyncpa %s13, 0
    loop: start=0, step=1, limit=4
    $region2: #{tpu_custom_call.1} parent=1 // loop_pre_header
      _
    $region3: #{tpu_custom_call.1} parent=1 // loop_header
      %s16 = sphi 0, %s20
      %p17 = scmp.ge.s32.totalorder %s16, 4
      %s26 = sphi 0, %s28
      %s29 = sphi 0, %s26
      %s30 = sphi 0, %s29
      %s46 = sphi 0, %s30
      %s50 = sphi 0, %s50
      %s52 = sphi 0, %s50
      %s53 = sphi 0, %s52
      %s67 = sphi 0, %s53
      %s71 = sphi 0, %s71
      %s73 = sphi 0, %s71
      %s74 = sphi 0, %s73
      %s88 = sphi 0, %s74
      %s94 = sphi 0, %s96
      %s97 = sphi 0, %s94
      %s98 = sphi 0, %s97
      %s114 = sphi 0, %s98
    $region4: #{tpu_custom_call.1} parent=1 // loop_header_branch
      %19 = sbr.rel (%p17) target = $region8
    $region5: #{tpu_custom_call.1} parent=1 // loop_body
      %s21 = ssub.s32 %s16, 1
      %s22 = ssub.s32 %s16, 2
      %s23 = sadd.s32 %s16, 1
      %s24 = ssub.s32 %s16, %s23
      %p25 = scmp.eq.s32.totalorder %s24, 0
      %s27 = sadd.s32 %s26, 1
      %s28 = scalar_select %p25, %s26, %s27
      %p31 = pneg %p25
      %p32 = scmp.eq.s32.totalorder %s16, 1
      %p33 = por %p31, %p32
      %p34 = scmp.ne.s32.totalorder %s26, %s29
      %p35 = scmp.eq.s32.totalorder %s16, 0
      %p36 = por %p34, %p35
      %p37 = scmp.ne.s32.totalorder %s26, %s29
      %p38 = scmp.eq.s32.totalorder %s21, 1
      %p39 = por %p37, %p38
      %p40 = scmp.ne.s32.totalorder %s29, %s30
      %p41 = scmp.eq.s32.totalorder %s21, 0
      %p42 = por %p40, %p41
      %p43 = scmp.ne.s32.totalorder %s29, %s30
      %p44 = scmp.eq.s32.totalorder %s22, 1
      %p45 = por %p43, %p44
      %p47 = scmp.ne.s32.totalorder %s30, %s46
      %p48 = scmp.eq.s32.totalorder %s22, 0
      %p49 = por %p47, %p48
      %s51 = sadd.s32 %s50, 1
      %p54 = scmp.eq.s32.totalorder %s16, 1
      %p55 = scmp.ne.s32.totalorder %s50, %s52
      %p56 = scmp.eq.s32.totalorder %s16, 0
      %p57 = por %p55, %p56
      %p58 = scmp.ne.s32.totalorder %s50, %s52
      %p59 = scmp.eq.s32.totalorder %s21, 1
      %p60 = por %p58, %p59
      %p61 = scmp.ne.s32.totalorder %s52, %s53
      %p62 = scmp.eq.s32.totalorder %s21, 0
      %p63 = por %p61, %p62
      %p64 = scmp.ne.s32.totalorder %s52, %s53
      %p65 = scmp.eq.s32.totalorder %s22, 1
      %p66 = por %p64, %p65
      %p68 = scmp.ne.s32.totalorder %s53, %s67
      %p69 = scmp.eq.s32.totalorder %s22, 0
      %p70 = por %p68, %p69
      %s72 = sadd.s32 %s71, 1
      %p75 = scmp.eq.s32.totalorder %s16, 1
      %p76 = scmp.ne.s32.totalorder %s71, %s73
      %p77 = scmp.eq.s32.totalorder %s16, 0
      %p78 = por %p76, %p77
      %p79 = scmp.ne.s32.totalorder %s71, %s73
      %p80 = scmp.eq.s32.totalorder %s21, 1
      %p81 = por %p79, %p80
      %p82 = scmp.ne.s32.totalorder %s73, %s74
      %p83 = scmp.eq.s32.totalorder %s21, 0
      %p84 = por %p82, %p83
      %p85 = scmp.ne.s32.totalorder %s73, %s74
      %p86 = scmp.eq.s32.totalorder %s22, 1
      %p87 = por %p85, %p86
      %p89 = scmp.ne.s32.totalorder %s74, %s88
      %p90 = scmp.eq.s32.totalorder %s22, 0
      %p91 = por %p89, %p90
      %s92 = ssub.s32 %s16, %s23
      %p93 = scmp.eq.s32.totalorder %s92, 0
      %s95 = sadd.s32 %s94, 1
      %s96 = scalar_select %p93, %s94, %s95
      %p99 = pneg %p93
      %p100 = scmp.eq.s32.totalorder %s16, 1
      %p101 = por %p99, %p100
      %p102 = scmp.ne.s32.totalorder %s94, %s97
      %p103 = scmp.eq.s32.totalorder %s16, 0
      %p104 = por %p102, %p103
      %p105 = scmp.ne.s32.totalorder %s94, %s97
      %p106 = scmp.eq.s32.totalorder %s21, 1
      %p107 = por %p105, %p106
      %p108 = scmp.ne.s32.totalorder %s97, %s98
      %p109 = scmp.eq.s32.totalorder %s21, 0
      %p110 = por %p108, %p109
      %p111 = scmp.ne.s32.totalorder %s97, %s98
      %p112 = scmp.eq.s32.totalorder %s22, 1
      %p113 = por %p111, %p112
      %p115 = scmp.ne.s32.totalorder %s98, %s114
      %p116 = scmp.eq.s32.totalorder %s22, 0
      %p117 = por %p115, %p116
      %p118 = scmp.le.s32.totalorder 1, %s16
      %p119 = scmp.lt.s32.totalorder %s16, 3
      %p120 = pnand %p118, %p119
      %p121 = pneg %p120
      // Predicated region
      $region9: #{tpu_custom_call.1} parent=5 // pred_check
        _
      $region10: #{tpu_custom_call.1} parent=5 // pred_check_branch
        %123 = sbr.rel (%p120) target = $region12
      $region11: #{tpu_custom_call.1} parent=5 // pred_region
        %s124 = ssub.s32 %s16, 1
        // Predicated region
        $region13: #{tpu_custom_call.1} parent=11 // pred_check
          %p125 = pneg %p63
        $region14: #{tpu_custom_call.1} parent=11 // pred_check_branch
          %127 = sbr.rel (%p125) target = $region16
        $region15: #{tpu_custom_call.1} parent=11 // pred_region
          %s129 = ssub.s32 5120, 5120
          %130 = vsyncadd [#allocation6], %s129
          %s131 = sshll.u32 [#allocation5], 4
          %s132 = int_to_ptr.vmem [resolvable:$true] %s131
          %137 = dma.hbm_to_vmem [thread:$0]  %s1, 5120, %s132, [#allocation6], 320, 320, 20
        $region16: #{tpu_custom_call.1} parent=11 // pred_fallthru
          _
        // Predicated region
        $region17: #{tpu_custom_call.1} parent=11 // pred_check
          %p138 = pneg %p84
        $region18: #{tpu_custom_call.1} parent=11 // pred_check_branch
          %140 = sbr.rel (%p138) target = $region20
        $region19: #{tpu_custom_call.1} parent=11 // pred_region
          %s142 = ssub.s32 4096, 4096
          %143 = vsyncadd [#allocation6], %s142
          %s144 = sshll.u32 [#allocation7], 4
          %s145 = int_to_ptr.vmem [resolvable:$true] %s144
          %150 = dma.hbm_to_vmem [thread:$0]  %s2, 4096, %s145, [#allocation6], 64, 64, 4
        $region20: #{tpu_custom_call.1} parent=11 // pred_fallthru
          _
      $region12: #{tpu_custom_call.1} parent=5 // pred_fallthru
        _
      %p151 = scmp.lt.s32.totalorder %s16, 2
      // Predicated region
      $region21: #{tpu_custom_call.1} parent=5 // pred_check
        %p152 = pneg %p151
      $region22: #{tpu_custom_call.1} parent=5 // pred_check_branch
        %154 = sbr.rel (%p152) target = $region24
      $region23: #{tpu_custom_call.1} parent=5 // pred_region
        // Predicated region
        $region25: #{tpu_custom_call.1} parent=23 // pred_check
          %p155 = pneg %p36
        $region26: #{tpu_custom_call.1} parent=23 // pred_check_branch
          %157 = sbr.rel (%p155) target = $region28
        $region27: #{tpu_custom_call.1} parent=23 // pred_region
          %s158 = sand.u32 %s26, 1
          %s159 = scalar_lea.sflag [#allocation3], %s158
          %s160 = sand.u32 %s26, 1
          %s161 = smul.addr %s160, 8
          %s162 = scalar_lea.vmem [#allocation2], %s161
          %s164 = ssub.s32 128, 128
          %165 = vsyncadd %s159, %s164
          %s166 = smul.addr %s16, 128
          %s167 = scalar_lea.hbm %s0, %s166
          %s169 = sshll.u32 %s162, 4
          %s170 = int_to_ptr.vmem [resolvable:$true] %s169
          %172 = dma.hbm_to_vmem [thread:$0]  %s167, 128, %s170, %s159
        $region28: #{tpu_custom_call.1} parent=23 // pred_fallthru
          _
      $region24: #{tpu_custom_call.1} parent=5 // pred_fallthru
        _
      %p173 = scmp.le.s32.totalorder 1, %s16
      %p174 = scmp.lt.s32.totalorder %s16, 3
      %p175 = pnand %p173, %p174
      %p176 = pneg %p175
      // Predicated region
      $region29: #{tpu_custom_call.1} parent=5 // pred_check
        _
      $region30: #{tpu_custom_call.1} parent=5 // pred_check_branch
        %178 = sbr.rel (%p175) target = $region32
      $region31: #{tpu_custom_call.1} parent=5 // pred_region
        %s179 = ssub.s32 %s16, 1
        %s180 = sand.u32 %s29, 1
        %s181 = scalar_lea.sflag [#allocation3], %s180
        %s182 = sand.u32 %s29, 1
        %s183 = smul.addr %s182, 8
        %s184 = scalar_lea.vmem [#allocation2], %s183
        // Predicated region
        $region33: #{tpu_custom_call.1} parent=31 // pred_check
          %p185 = pneg %p42
        $region34: #{tpu_custom_call.1} parent=31 // pred_check_branch
          %187 = sbr.rel (%p185) target = $region36
        $region35: #{tpu_custom_call.1} parent=31 // pred_region
          %188 = dma.done %s181, 128
        $region36: #{tpu_custom_call.1} parent=31 // pred_fallthru
          _
        // Predicated region
        $region37: #{tpu_custom_call.1} parent=31 // pred_check
          %p189 = pneg %p63
        $region38: #{tpu_custom_call.1} parent=31 // pred_check_branch
          %191 = sbr.rel (%p189) target = $region40
        $region39: #{tpu_custom_call.1} parent=31 // pred_region
          %192 = dma.done [#allocation6], 5120
        $region40: #{tpu_custom_call.1} parent=31 // pred_fallthru
          _
        // Predicated region
        $region41: #{tpu_custom_call.1} parent=31 // pred_check
          %p193 = pneg %p84
        $region42: #{tpu_custom_call.1} parent=31 // pred_check_branch
          %195 = sbr.rel (%p193) target = $region44
        $region43: #{tpu_custom_call.1} parent=31 // pred_region
          %196 = dma.done [#allocation6], 4096
        $region44: #{tpu_custom_call.1} parent=31 // pred_fallthru
          _
        %s197 = sand.u32 %s29, 1
        %s198 = scalar_lea.sflag [#allocation3], %s197
        %s199 = sand.u32 %s29, 1
        %s200 = smul.addr %s199, 8
        %s201 = scalar_lea.vmem [#allocation2], %s200
        %p202 = pneg %p42
        %p203 = pneg %p39
        %p204 = pneg %p63
        %p205 = pneg %p60
        %p206 = pneg %p84
        %p207 = pneg %p81
        %p208 = pneg %p110
        %p209 = pneg %p107
        %s210 = sand.u32 %s97, 1
        %s211 = scalar_lea.sflag [#allocation4], %s210
        %s212 = sand.u32 %s97, 1
        %s213 = smul.addr %s212, 8
        %s214 = scalar_lea.vmem [#allocation8], %s213
        %v216 = vld [vmem:[%s184] sm:$0xff]
        %v217 = vpack.c.bf16 %v216, %v216
        %v218 = vld [vmem:[#allocation5] sm:$0xff]
        %v219 = vld [vmem:[#allocation5 + $0x8] sm:$0xff]
        %v220 = vld [vmem:[#allocation5 + $0x10] sm:$0xf]
        %v221 = vld [vmem:[#allocation5 + $0x14] sm:$0xff]
        %v222 = vld [vmem:[#allocation5 + $0x1c] sm:$0xff]
        %v223 = vld [vmem:[#allocation5 + $0x24] sm:$0xf]
        %v224 = vld [vmem:[#allocation5 + $0x28] sm:$0xff]
        %v225 = vld [vmem:[#allocation5 + $0x30] sm:$0xff]
        %v226 = vld [vmem:[#allocation5 + $0x38] sm:$0xf]
        %v227 = vld [vmem:[#allocation5 + $0x3c] sm:$0xff]
        %v228 = vld [vmem:[#allocation5 + $0x44] sm:$0xff]
        %v229 = vld [vmem:[#allocation5 + $0x4c] sm:$0xf]
        %v230 = vld [vmem:[#allocation5 + $0x50] sm:$0xff]
        %v231 = vld [vmem:[#allocation5 + $0x58] sm:$0xff]
        %v232 = vld [vmem:[#allocation5 + $0x60] sm:$0xf]
        %v233 = vld [vmem:[#allocation5 + $0x64] sm:$0xff]
        %v234 = vld [vmem:[#allocation5 + $0x6c] sm:$0xff]
        %v235 = vld [vmem:[#allocation5 + $0x74] sm:$0xf]
        %v236 = vld [vmem:[#allocation5 + $0x78] sm:$0xff]
        %v237 = vld [vmem:[#allocation5 + $0x80] sm:$0xff]
        %v238 = vld [vmem:[#allocation5 + $0x88] sm:$0xf]
        %v239 = vld [vmem:[#allocation5 + $0x8c] sm:$0xff]
        %v240 = vld [vmem:[#allocation5 + $0x94] sm:$0xff]
        %v241 = vld [vmem:[#allocation5 + $0x9c] sm:$0xf]
        %v242 = vld [vmem:[#allocation5 + $0xa0] sm:$0xff]
        %v243 = vld [vmem:[#allocation5 + $0xa8] sm:$0xff]
        %v244 = vld [vmem:[#allocation5 + $0xb0] sm:$0xf]
        %v245 = vld [vmem:[#allocation5 + $0xb4] sm:$0xff]
        %v246 = vld [vmem:[#allocation5 + $0xbc] sm:$0xff]
        %v247 = vld [vmem:[#allocation5 + $0xc4] sm:$0xf]
        %v248 = vld [vmem:[#allocation5 + $0xc8] sm:$0xff]
        %v249 = vld [vmem:[#allocation5 + $0xd0] sm:$0xff]
        %v250 = vld [vmem:[#allocation5 + $0xd8] sm:$0xf]
        %v251 = vld [vmem:[#allocation5 + $0xdc] sm:$0xff]
        %v252 = vld [vmem:[#allocation5 + $0xe4] sm:$0xff]
        %v253 = vld [vmem:[#allocation5 + $0xec] sm:$0xf]
        %v254 = vld [vmem:[#allocation5 + $0xf0] sm:$0xff]
        %v255 = vld [vmem:[#allocation5 + $0xf8] sm:$0xff]
        %v256 = vld [vmem:[#allocation5 + $0x100] sm:$0xf]
        %v257 = vld [vmem:[#allocation5 + $0x104] sm:$0xff]
        %v258 = vld [vmem:[#allocation5 + $0x10c] sm:$0xff]
        %v259 = vld [vmem:[#allocation5 + $0x114] sm:$0xf]
        %v260 = vld [vmem:[#allocation5 + $0x118] sm:$0xff]
        %v261 = vld [vmem:[#allocation5 + $0x120] sm:$0xff]
        %v262 = vld [vmem:[#allocation5 + $0x128] sm:$0xf]
        %v263 = vld [vmem:[#allocation5 + $0x12c] sm:$0xff]
        %v264 = vld [vmem:[#allocation5 + $0x134] sm:$0xff]
        %v265 = vld [vmem:[#allocation5 + $0x13c] sm:$0xf]
        %v314 = vunpack.c.l.b16 %v218
        %v315 = vunpack.c.h.b16 %v218
        %v316 = vunpack.c.l.b16 %v219
        %v317 = vunpack.c.h.b16 %v219
        %v318 = vunpack.c.l.b16 %v220
        %v319 = vunpack.c.l.b16 %v221
        %v320 = vunpack.c.h.b16 %v221
        %v321 = vunpack.c.l.b16 %v222
        %v322 = vunpack.c.h.b16 %v222
        %v323 = vunpack.c.l.b16 %v223
        %v324 = vunpack.c.l.b16 %v224
        %v325 = vunpack.c.h.b16 %v224
        %v326 = vunpack.c.l.b16 %v225
        %v327 = vunpack.c.h.b16 %v225
        %v328 = vunpack.c.l.b16 %v226
        %v329 = vunpack.c.l.b16 %v227
        %v330 = vunpack.c.h.b16 %v227
        %v331 = vunpack.c.l.b16 %v228
        %v332 = vunpack.c.h.b16 %v228
        %v333 = vunpack.c.l.b16 %v229
        %v334 = vunpack.c.l.b16 %v230
        %v335 = vunpack.c.h.b16 %v230
        %v336 = vunpack.c.l.b16 %v231
        %v337 = vunpack.c.h.b16 %v231
        %v338 = vunpack.c.l.b16 %v232
        %v339 = vunpack.c.l.b16 %v233
        %v340 = vunpack.c.h.b16 %v233
        %v341 = vunpack.c.l.b16 %v234
        %v342 = vunpack.c.h.b16 %v234
        %v343 = vunpack.c.l.b16 %v235
        %v344 = vunpack.c.l.b16 %v236
        %v345 = vunpack.c.h.b16 %v236
        %v346 = vunpack.c.l.b16 %v237
        %v347 = vunpack.c.h.b16 %v237
        %v348 = vunpack.c.l.b16 %v238
        %v349 = vunpack.c.l.b16 %v239
        %v350 = vunpack.c.h.b16 %v239
        %v351 = vunpack.c.l.b16 %v240
        %v352 = vunpack.c.h.b16 %v240
        %v353 = vunpack.c.l.b16 %v241
        %v354 = vunpack.c.l.b16 %v242
        %v355 = vunpack.c.h.b16 %v242
        %v356 = vunpack.c.l.b16 %v243
        %v357 = vunpack.c.h.b16 %v243
        %v358 = vunpack.c.l.b16 %v244
        %v359 = vunpack.c.l.b16 %v245
        %v360 = vunpack.c.h.b16 %v245
        %v361 = vunpack.c.l.b16 %v246
        %v362 = vunpack.c.h.b16 %v246
        %v363 = vunpack.c.l.b16 %v247
        %v364 = vunpack.c.l.b16 %v248
        %v365 = vunpack.c.h.b16 %v248
        %v366 = vunpack.c.l.b16 %v249
        %v367 = vunpack.c.h.b16 %v249
        %v368 = vunpack.c.l.b16 %v250
        %v369 = vunpack.c.l.b16 %v251
        %v370 = vunpack.c.h.b16 %v251
        %v371 = vunpack.c.l.b16 %v252
        %v372 = vunpack.c.h.b16 %v252
        %v373 = vunpack.c.l.b16 %v253
        %v374 = vunpack.c.l.b16 %v254
        %v375 = vunpack.c.h.b16 %v254
        %v376 = vunpack.c.l.b16 %v255
        %v377 = vunpack.c.h.b16 %v255
        %v378 = vunpack.c.l.b16 %v256
        %v379 = vunpack.c.l.b16 %v257
        %v380 = vunpack.c.h.b16 %v257
        %v381 = vunpack.c.l.b16 %v258
        %v382 = vunpack.c.h.b16 %v258
        %v383 = vunpack.c.l.b16 %v259
        %v384 = vunpack.c.l.b16 %v260
        %v385 = vunpack.c.h.b16 %v260
        %v386 = vunpack.c.l.b16 %v261
        %v387 = vunpack.c.h.b16 %v261
        %v388 = vunpack.c.l.b16 %v262
        %v389 = vunpack.c.l.b16 %v263
        %v390 = vunpack.c.h.b16 %v263
        %v391 = vunpack.c.l.b16 %v264
        %v392 = vunpack.c.h.b16 %v264
        %v393 = vunpack.c.l.b16 %v265
        %v394 = vpack.c.b16 %v319, %v314
        %v395 = vpack.c.b16 %v320, %v315
        %v396 = vpack.c.b16 %v321, %v316
        %v397 = vpack.c.b16 %v322, %v317
        %v398 = vpack.c.b16 %v323, %v318
        %v399 = vpack.c.b16 %v329, %v324
        %v400 = vpack.c.b16 %v330, %v325
        %v401 = vpack.c.b16 %v331, %v326
        %v402 = vpack.c.b16 %v332, %v327
        %v403 = vpack.c.b16 %v333, %v328
        %v404 = vpack.c.b16 %v339, %v334
        %v405 = vpack.c.b16 %v340, %v335
        %v406 = vpack.c.b16 %v341, %v336
        %v407 = vpack.c.b16 %v342, %v337
        %v408 = vpack.c.b16 %v343, %v338
        %v409 = vpack.c.b16 %v349, %v344
        %v410 = vpack.c.b16 %v350, %v345
        %v411 = vpack.c.b16 %v351, %v346
        %v412 = vpack.c.b16 %v352, %v347
        %v413 = vpack.c.b16 %v353, %v348
        %v414 = vpack.c.b16 %v359, %v354
        %v415 = vpack.c.b16 %v360, %v355
        %v416 = vpack.c.b16 %v361, %v356
        %v417 = vpack.c.b16 %v362, %v357
        %v418 = vpack.c.b16 %v363, %v358
        %v419 = vpack.c.b16 %v369, %v364
        %v420 = vpack.c.b16 %v370, %v365
        %v421 = vpack.c.b16 %v371, %v366
        %v422 = vpack.c.b16 %v372, %v367
        %v423 = vpack.c.b16 %v373, %v368
        %v424 = vpack.c.b16 %v379, %v374
        %v425 = vpack.c.b16 %v380, %v375
        %v426 = vpack.c.b16 %v381, %v376
        %v427 = vpack.c.b16 %v382, %v377
        %v428 = vpack.c.b16 %v383, %v378
        %v429 = vpack.c.b16 %v389, %v384
        %v430 = vpack.c.b16 %v390, %v385
        %v431 = vpack.c.b16 %v391, %v386
        %v432 = vpack.c.b16 %v392, %v387
        %v433 = vpack.c.b16 %v393, %v388
        %474 = vmatprep.subr.bf16.mxu0 %v395
        %475 = vmatpush1.bf16.msra.mxu0 %v394
        %476 = vmatprep.subr.bf16.mxu0 %v400
        %477 = vmatpush1.bf16.msra.mxu0 %v399
        %478 = vmatprep.subr.bf16.mxu0 %v405
        %479 = vmatpush1.bf16.msra.mxu0 %v404
        %480 = vmatprep.subr.bf16.mxu0 %v410
        %481 = vmatpush1.bf16.msra.mxu0 %v409
        %482 = vmatprep.subr.bf16.mxu0 %v415
        %483 = vmatpush1.bf16.msra.mxu0 %v414
        %484 = vmatprep.subr.bf16.mxu0 %v420
        %485 = vmatpush1.bf16.msra.mxu0 %v419
        %486 = vmatprep.subr.bf16.mxu0 %v425
        %487 = vmatpush1.bf16.msra.mxu0 %v424
        %488 = vmatprep.subr.bf16.mxu0 %v430
        %489 = vmatpush1.bf16.msra.mxu0 %v429
        %490 = vmatprep.subr.bf16.mxu0 0
        %491 = vmatpush1.bf16.msra.mxu0 0
        %492 = vmatprep.subr.bf16.mxu0 0
        %493 = vmatpush1.bf16.msra.mxu0 0
        %494 = vmatprep.subr.bf16.mxu0 0
        %495 = vmatpush1.bf16.msra.mxu0 0
        %496 = vmatprep.subr.bf16.mxu0 0
        %497 = vmatpush1.bf16.msra.mxu0 0
        %498 = vmatprep.subr.bf16.mxu0 0
        %499 = vmatpush1.bf16.msra.mxu0 0
        %500 = vmatprep.subr.bf16.mxu0 0
        %501 = vmatpush1.bf16.msra.mxu0 0
        %502 = vmatprep.subr.bf16.mxu0 0
        %503 = vmatpush1.bf16.msra.mxu0 0
        %504 = vmatprep.subr.bf16.mxu0 0
        %505 = vmatpush1.bf16.msra.mxu0 0
        %506 = vmatprep.mubr.bf16.mxu0 0
        %507 = vmatmul.mubr.bf16.gmra.mrb[0].mxu0 %v217
        %v508 = vpop.f32.mrb[0].mxu0
        %v509 = vadd.f32 0.0, %v508
        %v510 = vpop.f32.mrb[0].mxu0
        %v511 = vadd.f32 0.0, %v510
        %v512 = vpop.f32.mrb[0].mxu0
        %v513 = vpop.f32.mrb[0].mxu0
        %514 = vdwg.mxu0
        %515 = vmatprep.subr.bf16.mxu0 %v397
        %516 = vmatpush1.bf16.msra.mxu0 %v396
        %517 = vmatprep.subr.bf16.mxu0 %v402
        %518 = vmatpush1.bf16.msra.mxu0 %v401
        %519 = vmatprep.subr.bf16.mxu0 %v407
        %520 = vmatpush1.bf16.msra.mxu0 %v406
        %521 = vmatprep.subr.bf16.mxu0 %v412
        %522 = vmatpush1.bf16.msra.mxu0 %v411
        %523 = vmatprep.subr.bf16.mxu0 %v417
        %524 = vmatpush1.bf16.msra.mxu0 %v416
        %525 = vmatprep.subr.bf16.mxu0 %v422
        %526 = vmatpush1.bf16.msra.mxu0 %v421
        %527 = vmatprep.subr.bf16.mxu0 %v427
        %528 = vmatpush1.bf16.msra.mxu0 %v426
        %529 = vmatprep.subr.bf16.mxu0 %v432
        %530 = vmatpush1.bf16.msra.mxu0 %v431
        %531 = vmatprep.subr.bf16.mxu0 0
        %532 = vmatpush1.bf16.msra.mxu0 0
        %533 = vmatprep.subr.bf16.mxu0 0
        %534 = vmatpush1.bf16.msra.mxu0 0
        %535 = vmatprep.subr.bf16.mxu0 0
        %536 = vmatpush1.bf16.msra.mxu0 0
        %537 = vmatprep.subr.bf16.mxu0 0
        %538 = vmatpush1.bf16.msra.mxu0 0
        %539 = vmatprep.subr.bf16.mxu0 0
        %540 = vmatpush1.bf16.msra.mxu0 0
        %541 = vmatprep.subr.bf16.mxu0 0
        %542 = vmatpush1.bf16.msra.mxu0 0
        %543 = vmatprep.subr.bf16.mxu0 0
        %544 = vmatpush1.bf16.msra.mxu0 0
        %545 = vmatprep.subr.bf16.mxu0 0
        %546 = vmatpush1.bf16.msra.mxu0 0
        %547 = vmatprep.mubr.bf16.mxu0 0
        %548 = vmatmul.mubr.bf16.gmra.mrb[0].mxu0 %v217
        %v549 = vpop.f32.mrb[0].mxu0
        %v550 = vadd.f32 0.0, %v549
        %v551 = vpop.f32.mrb[0].mxu0
        %v552 = vadd.f32 0.0, %v551
        %v553 = vpop.f32.mrb[0].mxu0
        %v554 = vpop.f32.mrb[0].mxu0
        %555 = vdwg.mxu0
        %556 = vmatprep.subr.bf16.mxu0 0
        %557 = vmatpush1.bf16.msra.mxu0 %v398
        %558 = vmatprep.subr.bf16.mxu0 0
        %559 = vmatpush1.bf16.msra.mxu0 %v403
        %560 = vmatprep.subr.bf16.mxu0 0
        %561 = vmatpush1.bf16.msra.mxu0 %v408
        %562 = vmatprep.subr.bf16.mxu0 0
        %563 = vmatpush1.bf16.msra.mxu0 %v413
        %564 = vmatprep.subr.bf16.mxu0 0
        %565 = vmatpush1.bf16.msra.mxu0 %v418
        %566 = vmatprep.subr.bf16.mxu0 0
        %567 = vmatpush1.bf16.msra.mxu0 %v423
        %568 = vmatprep.subr.bf16.mxu0 0
        %569 = vmatpush1.bf16.msra.mxu0 %v428
        %570 = vmatprep.subr.bf16.mxu0 0
        %571 = vmatpush1.bf16.msra.mxu0 %v433
        %572 = vmatprep.subr.bf16.mxu0 0
        %573 = vmatpush1.bf16.msra.mxu0 0
        %574 = vmatprep.subr.bf16.mxu0 0
        %575 = vmatpush1.bf16.msra.mxu0 0
        %576 = vmatprep.subr.bf16.mxu0 0
        %577 = vmatpush1.bf16.msra.mxu0 0
        %578 = vmatprep.subr.bf16.mxu0 0
        %579 = vmatpush1.bf16.msra.mxu0 0
        %580 = vmatprep.subr.bf16.mxu0 0
        %581 = vmatpush1.bf16.msra.mxu0 0
        %582 = vmatprep.subr.bf16.mxu0 0
        %583 = vmatpush1.bf16.msra.mxu0 0
        %584 = vmatprep.subr.bf16.mxu0 0
        %585 = vmatpush1.bf16.msra.mxu0 0
        %586 = vmatprep.subr.bf16.mxu0 0
        %587 = vmatpush1.bf16.msra.mxu0 0
        %588 = vmatprep.mubr.bf16.mxu0 0
        %589 = vmatmul.mubr.bf16.gmra.mrb[0].mxu0 %v217
        %v590 = vpop.f32.mrb[0].mxu0
        %v591 = vadd.f32 0.0, %v590
        %v592 = vpop.f32.mrb[0].mxu0
        %v593 = vpop.f32.mrb[0].mxu0
        %v594 = vpop.f32.mrb[0].mxu0
        %595 = vdwg.mxu0
        %v596 = vmax.f32 %v509, 0.0
        %v597 = vmax.f32 %v511, 0.0
        %v598 = vmax.f32 %v550, 0.0
        %v599 = vmax.f32 %v552, 0.0
        %v600 = vmul.f32 %v596, %v596
        %v601 = vmul.f32 %v597, %v597
        %v602 = vmul.f32 %v598, %v598
        %v603 = vmul.f32 %v599, %v599
        %v604 = vpack.c.bf16 %v600, %v600
        %v605 = vpack.c.bf16 %v601, %v601
        %v606 = vpack.c.bf16 %v602, %v602
        %v607 = vpack.c.bf16 %v603, %v603
        %v608 = vld [vmem:[#allocation7] sm:$0xf]
        %v609 = vld [vmem:[#allocation7 + $0x4] sm:$0xf]
        %v610 = vld [vmem:[#allocation7 + $0x8] sm:$0xf]
        %v611 = vld [vmem:[#allocation7 + $0xc] sm:$0xf]
        %v612 = vld [vmem:[#allocation7 + $0x10] sm:$0xf]
        %v613 = vld [vmem:[#allocation7 + $0x14] sm:$0xf]
        %v614 = vld [vmem:[#allocation7 + $0x18] sm:$0xf]
        %v615 = vld [vmem:[#allocation7 + $0x1c] sm:$0xf]
        %v616 = vld [vmem:[#allocation7 + $0x20] sm:$0xf]
        %v617 = vld [vmem:[#allocation7 + $0x24] sm:$0xf]
        %v618 = vld [vmem:[#allocation7 + $0x28] sm:$0xf]
        %v619 = vld [vmem:[#allocation7 + $0x2c] sm:$0xf]
        %v620 = vld [vmem:[#allocation7 + $0x30] sm:$0xf]
        %v621 = vld [vmem:[#allocation7 + $0x34] sm:$0xf]
        %v622 = vld [vmem:[#allocation7 + $0x38] sm:$0xf]
        %v623 = vld [vmem:[#allocation7 + $0x3c] sm:$0xf]
        %v624 = vld [vmem:[#allocation7 + $0x40] sm:$0xf]
        %v625 = vld [vmem:[#allocation7 + $0x44] sm:$0xf]
        %v626 = vld [vmem:[#allocation7 + $0x48] sm:$0xf]
        %v627 = vld [vmem:[#allocation7 + $0x4c] sm:$0xf]
        %v628 = vld [vmem:[#allocation7 + $0x50] sm:$0xf]
        %v629 = vld [vmem:[#allocation7 + $0x54] sm:$0xf]
        %v630 = vld [vmem:[#allocation7 + $0x58] sm:$0xf]
        %v631 = vld [vmem:[#allocation7 + $0x5c] sm:$0xf]
        %v632 = vld [vmem:[#allocation7 + $0x60] sm:$0xf]
        %v633 = vld [vmem:[#allocation7 + $0x64] sm:$0xf]
        %v634 = vld [vmem:[#allocation7 + $0x68] sm:$0xf]
        %v635 = vld [vmem:[#allocation7 + $0x6c] sm:$0xf]
        %v636 = vld [vmem:[#allocation7 + $0x70] sm:$0xf]
        %v637 = vld [vmem:[#allocation7 + $0x74] sm:$0xf]
        %v638 = vld [vmem:[#allocation7 + $0x78] sm:$0xf]
        %v639 = vld [vmem:[#allocation7 + $0x7c] sm:$0xf]
        %v640 = vld [vmem:[#allocation7 + $0x80] sm:$0xf]
        %v641 = vld [vmem:[#allocation7 + $0x84] sm:$0xf]
        %v642 = vld [vmem:[#allocation7 + $0x88] sm:$0xf]
        %v643 = vld [vmem:[#allocation7 + $0x8c] sm:$0xf]
        %v644 = vld [vmem:[#allocation7 + $0x90] sm:$0xf]
        %v645 = vld [vmem:[#allocation7 + $0x94] sm:$0xf]
        %v646 = vld [vmem:[#allocation7 + $0x98] sm:$0xf]
        %v647 = vld [vmem:[#allocation7 + $0x9c] sm:$0xf]
        %v648 = vld [vmem:[#allocation7 + $0xa0] sm:$0xf]
        %v649 = vld [vmem:[#allocation7 + $0xa4] sm:$0xf]
        %v650 = vld [vmem:[#allocation7 + $0xa8] sm:$0xf]
        %v651 = vld [vmem:[#allocation7 + $0xac] sm:$0xf]
        %v652 = vld [vmem:[#allocation7 + $0xb0] sm:$0xf]
        %v653 = vld [vmem:[#allocation7 + $0xb4] sm:$0xf]
        %v654 = vld [vmem:[#allocation7 + $0xb8] sm:$0xf]
        %v655 = vld [vmem:[#allocation7 + $0xbc] sm:$0xf]
        %v656 = vld [vmem:[#allocation7 + $0xc0] sm:$0xf]
        %v657 = vld [vmem:[#allocation7 + $0xc4] sm:$0xf]
        %v658 = vld [vmem:[#allocation7 + $0xc8] sm:$0xf]
        %v659 = vld [vmem:[#allocation7 + $0xcc] sm:$0xf]
        %v660 = vld [vmem:[#allocation7 + $0xd0] sm:$0xf]
        %v661 = vld [vmem:[#allocation7 + $0xd4] sm:$0xf]
        %v662 = vld [vmem:[#allocation7 + $0xd8] sm:$0xf]
        %v663 = vld [vmem:[#allocation7 + $0xdc] sm:$0xf]
        %v664 = vld [vmem:[#allocation7 + $0xe0] sm:$0xf]
        %v665 = vld [vmem:[#allocation7 + $0xe4] sm:$0xf]
        %v666 = vld [vmem:[#allocation7 + $0xe8] sm:$0xf]
        %v667 = vld [vmem:[#allocation7 + $0xec] sm:$0xf]
        %v668 = vld [vmem:[#allocation7 + $0xf0] sm:$0xf]
        %v669 = vld [vmem:[#allocation7 + $0xf4] sm:$0xf]
        %v670 = vld [vmem:[#allocation7 + $0xf8] sm:$0xf]
        %v671 = vld [vmem:[#allocation7 + $0xfc] sm:$0xf]
        %v736 = vunpack.c.l.b16 %v608
        %v737 = vunpack.c.l.b16 %v609
        %v738 = vunpack.c.l.b16 %v610
        %v739 = vunpack.c.l.b16 %v611
        %v740 = vunpack.c.l.b16 %v612
        %v741 = vunpack.c.l.b16 %v613
        %v742 = vunpack.c.l.b16 %v614
        %v743 = vunpack.c.l.b16 %v615
        %v744 = vunpack.c.l.b16 %v616
        %v745 = vunpack.c.l.b16 %v617
        %v746 = vunpack.c.l.b16 %v618
        %v747 = vunpack.c.l.b16 %v619
        %v748 = vunpack.c.l.b16 %v620
        %v749 = vunpack.c.l.b16 %v621
        %v750 = vunpack.c.l.b16 %v622
        %v751 = vunpack.c.l.b16 %v623
        %v752 = vunpack.c.l.b16 %v624
        %v753 = vunpack.c.l.b16 %v625
        %v754 = vunpack.c.l.b16 %v626
        %v755 = vunpack.c.l.b16 %v627
        %v756 = vunpack.c.l.b16 %v628
        %v757 = vunpack.c.l.b16 %v629
        %v758 = vunpack.c.l.b16 %v630
        %v759 = vunpack.c.l.b16 %v631
        %v760 = vunpack.c.l.b16 %v632
        %v761 = vunpack.c.l.b16 %v633
        %v762 = vunpack.c.l.b16 %v634
        %v763 = vunpack.c.l.b16 %v635
        %v764 = vunpack.c.l.b16 %v636
        %v765 = vunpack.c.l.b16 %v637
        %v766 = vunpack.c.l.b16 %v638
        %v767 = vunpack.c.l.b16 %v639
        %v768 = vunpack.c.l.b16 %v640
        %v769 = vunpack.c.l.b16 %v641
        %v770 = vunpack.c.l.b16 %v642
        %v771 = vunpack.c.l.b16 %v643
        %v772 = vunpack.c.l.b16 %v644
        %v773 = vunpack.c.l.b16 %v645
        %v774 = vunpack.c.l.b16 %v646
        %v775 = vunpack.c.l.b16 %v647
        %v776 = vunpack.c.l.b16 %v648
        %v777 = vunpack.c.l.b16 %v649
        %v778 = vunpack.c.l.b16 %v650
        %v779 = vunpack.c.l.b16 %v651
        %v780 = vunpack.c.l.b16 %v652
        %v781 = vunpack.c.l.b16 %v653
        %v782 = vunpack.c.l.b16 %v654
        %v783 = vunpack.c.l.b16 %v655
        %v784 = vunpack.c.l.b16 %v656
        %v785 = vunpack.c.l.b16 %v657
        %v786 = vunpack.c.l.b16 %v658
        %v787 = vunpack.c.l.b16 %v659
        %v788 = vunpack.c.l.b16 %v660
        %v789 = vunpack.c.l.b16 %v661
        %v790 = vunpack.c.l.b16 %v662
        %v791 = vunpack.c.l.b16 %v663
        %v792 = vunpack.c.l.b16 %v664
        %v793 = vunpack.c.l.b16 %v665
        %v794 = vunpack.c.l.b16 %v666
        %v795 = vunpack.c.l.b16 %v667
        %v796 = vunpack.c.l.b16 %v668
        %v797 = vunpack.c.l.b16 %v669
        %v798 = vunpack.c.l.b16 %v670
        %v799 = vunpack.c.l.b16 %v671
        %v800 = vpack.c.b16 %v737, %v736
        %v801 = vpack.c.b16 %v739, %v738
        %v802 = vpack.c.b16 %v741, %v740
        %v803 = vpack.c.b16 %v743, %v742
        %v804 = vpack.c.b16 %v745, %v744
        %v805 = vpack.c.b16 %v747, %v746
        %v806 = vpack.c.b16 %v749, %v748
        %v807 = vpack.c.b16 %v751, %v750
        %v808 = vpack.c.b16 %v753, %v752
        %v809 = vpack.c.b16 %v755, %v754
        %v810 = vpack.c.b16 %v757, %v756
        %v811 = vpack.c.b16 %v759, %v758
        %v812 = vpack.c.b16 %v761, %v760
        %v813 = vpack.c.b16 %v763, %v762
        %v814 = vpack.c.b16 %v765, %v764
        %v815 = vpack.c.b16 %v767, %v766
        %v816 = vpack.c.b16 %v769, %v768
        %v817 = vpack.c.b16 %v771, %v770
        %v818 = vpack.c.b16 %v773, %v772
        %v819 = vpack.c.b16 %v775, %v774
        %v820 = vpack.c.b16 %v777, %v776
        %v821 = vpack.c.b16 %v779, %v778
        %v822 = vpack.c.b16 %v781, %v780
        %v823 = vpack.c.b16 %v783, %v782
        %v824 = vpack.c.b16 %v785, %v784
        %v825 = vpack.c.b16 %v787, %v786
        %v826 = vpack.c.b16 %v789, %v788
        %v827 = vpack.c.b16 %v791, %v790
        %v828 = vpack.c.b16 %v793, %v792
        %v829 = vpack.c.b16 %v795, %v794
        %v830 = vpack.c.b16 %v797, %v796
        %v831 = vpack.c.b16 %v799, %v798
        %864 = vmatprep.subr.bf16.mxu0 0
        %865 = vmatpush1.bf16.msra.mxu0 %v800
        %866 = vmatprep.subr.bf16.mxu0 0
        %867 = vmatpush1.bf16.msra.mxu0 %v801
        %868 = vmatprep.subr.bf16.mxu0 0
        %869 = vmatpush1.bf16.msra.mxu0 %v802
        %870 = vmatprep.subr.bf16.mxu0 0
        %871 = vmatpush1.bf16.msra.mxu0 %v803
        %872 = vmatprep.subr.bf16.mxu0 0
        %873 = vmatpush1.bf16.msra.mxu0 %v804
        %874 = vmatprep.subr.bf16.mxu0 0
        %875 = vmatpush1.bf16.msra.mxu0 %v805
        %876 = vmatprep.subr.bf16.mxu0 0
        %877 = vmatpush1.bf16.msra.mxu0 %v806
        %878 = vmatprep.subr.bf16.mxu0 0
        %879 = vmatpush1.bf16.msra.mxu0 %v807
        %880 = vmatprep.subr.bf16.mxu0 0
        %881 = vmatpush1.bf16.msra.mxu0 %v808
        %882 = vmatprep.subr.bf16.mxu0 0
        %883 = vmatpush1.bf16.msra.mxu0 %v809
        %884 = vmatprep.subr.bf16.mxu0 0
        %885 = vmatpush1.bf16.msra.mxu0 %v810
        %886 = vmatprep.subr.bf16.mxu0 0
        %887 = vmatpush1.bf16.msra.mxu0 %v811
        %888 = vmatprep.subr.bf16.mxu0 0
        %889 = vmatpush1.bf16.msra.mxu0 %v812
        %890 = vmatprep.subr.bf16.mxu0 0
        %891 = vmatpush1.bf16.msra.mxu0 %v813
        %892 = vmatprep.subr.bf16.mxu0 0
        %893 = vmatpush1.bf16.msra.mxu0 %v814
        %894 = vmatprep.subr.bf16.mxu0 0
        %895 = vmatpush1.bf16.msra.mxu0 %v815
        %896 = vmatprep.mubr.bf16.mxu0 %v605
        %897 = vmatmul.mubr.bf16.gmra.mrb[0].mxu0 %v604
        %v898 = vpop.f32.mrb[0].mxu0
        %v899 = vadd.f32 0.0, %v898
        %v900 = vpop.f32.mrb[0].mxu0
        %v901 = vpop.f32.mrb[0].mxu0
        %v902 = vpop.f32.mrb[0].mxu0
        %903 = vdwg.mxu0
        %904 = vmatprep.subr.bf16.mxu0 0
        %905 = vmatpush1.bf16.msra.mxu0 %v816
        %906 = vmatprep.subr.bf16.mxu0 0
        %907 = vmatpush1.bf16.msra.mxu0 %v817
        %908 = vmatprep.subr.bf16.mxu0 0
        %909 = vmatpush1.bf16.msra.mxu0 %v818
        %910 = vmatprep.subr.bf16.mxu0 0
        %911 = vmatpush1.bf16.msra.mxu0 %v819
        %912 = vmatprep.subr.bf16.mxu0 0
        %913 = vmatpush1.bf16.msra.mxu0 %v820
        %914 = vmatprep.subr.bf16.mxu0 0
        %915 = vmatpush1.bf16.msra.mxu0 %v821
        %916 = vmatprep.subr.bf16.mxu0 0
        %917 = vmatpush1.bf16.msra.mxu0 %v822
        %918 = vmatprep.subr.bf16.mxu0 0
        %919 = vmatpush1.bf16.msra.mxu0 %v823
        %920 = vmatprep.subr.bf16.mxu0 0
        %921 = vmatpush1.bf16.msra.mxu0 %v824
        %922 = vmatprep.subr.bf16.mxu0 0
        %923 = vmatpush1.bf16.msra.mxu0 %v825
        %924 = vmatprep.subr.bf16.mxu0 0
        %925 = vmatpush1.bf16.msra.mxu0 %v826
        %926 = vmatprep.subr.bf16.mxu0 0
        %927 = vmatpush1.bf16.msra.mxu0 %v827
        %928 = vmatprep.subr.bf16.mxu0 0
        %929 = vmatpush1.bf16.msra.mxu0 %v828
        %930 = vmatprep.subr.bf16.mxu0 0
        %931 = vmatpush1.bf16.msra.mxu0 %v829
        %932 = vmatprep.subr.bf16.mxu0 0
        %933 = vmatpush1.bf16.msra.mxu0 %v830
        %934 = vmatprep.subr.bf16.mxu0 0
        %935 = vmatpush1.bf16.msra.mxu0 %v831
        %936 = vmatprep.mubr.bf16.mxu0 %v607
        %937 = vmatmul.mubr.bf16.gmra.mrb[0].mxu0 %v606
        %v938 = vpop.f32.mrb[0].mxu0
        %v939 = vadd.f32 %v899, %v938
        %v940 = vpop.f32.mrb[0].mxu0
        %v941 = vpop.f32.mrb[0].mxu0
        %v942 = vpop.f32.mrb[0].mxu0
        %943 = vdwg.mxu0
        %v944 = vxor.u32 %v591, 2147483648
        %v945 = vmul.f32 %v944, 1.442695
        %v946 = vpow.pop %v945
        %v947 = vadd.f32 %v946, 1.0
        %v948 = vrcp.pop %v947
        %v949 = vmul.f32 1.0, %v948
        %v950 = vmul.f32 %v949, %v939
        %951 = vst [vmem:[%s214] sm:$0xff] %v950
        %s952 = sand.u32 %s97, 1
        %s953 = scalar_lea.sflag [#allocation4], %s952
        %s954 = sand.u32 %s97, 1
        %s955 = smul.addr %s954, 8
        %s956 = scalar_lea.vmem [#allocation8], %s955
        // Predicated region
        $region45: #{tpu_custom_call.1} parent=31 // pred_check
          %p957 = pneg %p107
        $region46: #{tpu_custom_call.1} parent=31 // pred_check_branch
          %959 = sbr.rel (%p957) target = $region48
        $region47: #{tpu_custom_call.1} parent=31 // pred_region
          %s961 = ssub.s32 128, 128
          %962 = vsyncadd %s953, %s961
          %s963 = smul.addr %s21, 128
          %s964 = scalar_lea.hbm %s3, %s963
          %s966 = sshll.u32 %s956, 4
          %s967 = int_to_ptr.vmem [resolvable:$true] %s966
          %969 = dma.vmem_to_hbm [thread:$0]  %s967, 128, %s964, %s953
        $region48: #{tpu_custom_call.1} parent=31 // pred_fallthru
          _
      $region32: #{tpu_custom_call.1} parent=5 // pred_fallthru
        _
      %p970 = scmp.le.s32.totalorder 2, %s16
      // Predicated region
      $region49: #{tpu_custom_call.1} parent=5 // pred_check
        %p971 = pneg %p970
      $region50: #{tpu_custom_call.1} parent=5 // pred_check_branch
        %973 = sbr.rel (%p971) target = $region52
      $region51: #{tpu_custom_call.1} parent=5 // pred_region
        %s974 = ssub.s32 %s16, 2
        // Predicated region
        $region53: #{tpu_custom_call.1} parent=51 // pred_check
          %p975 = pneg %p113
        $region54: #{tpu_custom_call.1} parent=51 // pred_check_branch
          %977 = sbr.rel (%p975) target = $region56
        $region55: #{tpu_custom_call.1} parent=51 // pred_region
          %s978 = sand.u32 %s98, 1
          %s979 = scalar_lea.sflag [#allocation4], %s978
          %s980 = sand.u32 %s98, 1
          %s981 = smul.addr %s980, 8
          %s982 = scalar_lea.vmem [#allocation8], %s981
          %983 = dma.done %s979, 128
        $region56: #{tpu_custom_call.1} parent=51 // pred_fallthru
          _
      $region52: #{tpu_custom_call.1} parent=5 // pred_fallthru
        _
    $region6: #{tpu_custom_call.1} parent=1 // loop_footer
      %s20 = sadd.s32 1, %s16
    $region7: #{tpu_custom_call.1} parent=1 // loop_footer_branch
      %15 = sbr.rel target = $region3
    $region8: #{tpu_custom_call.1} parent=1 // loop_exit
      _
    %984 = vsyncpa [#allocation3], 1
    %s985 = scalar_lea.sflag [#allocation3], 1
    %986 = vsyncpa %s985, 1
    %987 = vsyncpa [#allocation6], 1
    %988 = vsyncpa [#allocation4], 1
    %s989 = scalar_lea.sflag [#allocation4], 1
    %990 = vsyncpa %s989, 1

</llo_original>
